<compile_context>
chip_gen: v5e
topology: v5e:2x2
jax: 0.10.0
libtpu: 0.0.40
codegen_flags: <defaults>
</compile_context>

<pallas_src>
import math

import jax
import jax.numpy as jnp
from jax.experimental import pallas as pl
from jax.experimental.pallas import tpu as pltpu


# -----------------------------------------------------------------------------
# Fixed sinusoidal table (module __init__; not the forward hot path).
# -----------------------------------------------------------------------------
def make_sinusoidal_encoding(max_len: int, d_model: int, dtype=jnp.float32):
    """Sinusoidal positional-encoding table, shape (max_len, d_model)."""
    position = jnp.arange(max_len, dtype=jnp.float32)[:, None]                 # (max_len, 1)
    div_term = jnp.exp(jnp.arange(0, d_model, 2, dtype=jnp.float32)
                       * -(math.log(10000.0) / d_model))                        # (ceil(d/2),)
    angles = position * div_term                                                # (max_len, ceil(d/2))
    n_even = (d_model + 1) // 2
    n_odd = d_model // 2
    enc = jnp.zeros((max_len, d_model), dtype=jnp.float32)
    enc = enc.at[:, 0::2].set(jnp.sin(angles)[:, :n_even])
    enc = enc.at[:, 1::2].set(jnp.cos(angles)[:, :n_odd])
    return enc.astype(dtype)


# -----------------------------------------------------------------------------
# Tiling helpers.
# -----------------------------------------------------------------------------
_TARGET_TILE_BYTES = 4 << 20   # per x/out tile; 4 MiB amortizes the ~0.35us/step
                               # overhead on v6e/v7x while the explicit VMEM limit
                               # below keeps v5e (16 MiB scoped default) safe.
_MIN_KERNEL_ELEMS = 1 << 16    # below this, pallas_call overhead dominates.


def _row_multiple(dtype) -> int:
    # Sublane packing: (8,128) f32, (16,128) bf16, (32,128) int8/fp8.
    return {4: 8, 2: 16, 1: 32}.get(jnp.dtype(dtype).itemsize, 8)


def _round_up(n: int, m: int) -> int:
    return ((n + m - 1) // m) * m


def _choose_row_tile(seq_len: int, row_bytes: int, row_mult: int,
                     target_bytes: int = _TARGET_TILE_BYTES) -> int:
    """Row tile: multiple of row_mult, within the tile budget, and (when the
    sequence allows it) small enough for >= 2 row steps (pipelining + v7x split)."""
    if seq_len <= row_mult:
        return seq_len                                  # single full-extent block
    budget_rows = max(row_mult,
                      (target_bytes // max(row_bytes, 1)) // row_mult * row_mult)
    two_step_rows = _round_up(pl.cdiv(seq_len, 2), row_mult)
    return max(row_mult, min(budget_rows, two_step_rows))


def _vmem_limit(tile_x_bytes: int, tile_enc_bytes: int) -> int:
    # x-in + out double-buffered, encoding double-buffered, + compiler headroom.
    total = 4 * tile_x_bytes + 2 * tile_enc_bytes + (4 << 20)
    return int(min(max(total, 32 << 20), 48 << 20))


# -----------------------------------------------------------------------------
# Kernels: pure VPU elementwise adds; encoding broadcast over batch in-kernel.
# -----------------------------------------------------------------------------
def _pe_add_seq_first_kernel(x_ref, enc_ref, o_ref):
    # x_ref / o_ref: (ts, bc*D) lane-dense; enc_ref: (ts, D).
    _, d = enc_ref.shape
    nb = x_ref.shape[1] // d
    enc = enc_ref[...]
    for b in range(nb):                       # static unroll; 128-lane aligned slices
        sl = slice(b * d, (b + 1) * d)
        o_ref[:, sl] = x_ref[:, sl] + enc


def _pe_add_batch_first_kernel(x_ref, enc_ref, o_ref):
    # x_ref / o_ref: (bc, ts, D); enc_ref: (ts, D) broadcasts over the leading dim.
    o_ref[...] = x_ref[...] + enc_ref[...]


# -----------------------------------------------------------------------------
# Forward wrapper.
# -----------------------------------------------------------------------------
def positional_encoding_forward(x: jax.Array, encoding: jax.Array, *,
                                batch_first: bool = False,
                                block_rows: int | None = None,
                                block_batch: int | None = None,
                                force_kernel: bool = False,
                                donate_x: bool = False) -> jax.Array:
    """x: (S, B, D) if batch_first=False (module default), else (B, S, D).
    encoding: (max_len, D) sinusoidal table (NOT batch-tiled)."""
    if batch_first:
        B, S, D = x.shape
    else:
        S, B, D = x.shape
    max_len, d_enc = encoding.shape
    assert d_enc == D and max_len >= S
    # TODO(synk): trace-time assert only; no runtime guard for S > max_len under
    # shape-polymorphic tracing.

    enc = encoding.astype(x.dtype)   # single-dtype streams; kernel adds in x.dtype
    itemsize = jnp.dtype(x.dtype).itemsize

    # Lane-density guard: non-128-multiple d_model would emit masked vst.msk
    # stores — the fused XLA broadcast-add is the better choice there (also for
    # tiny inputs where launch/DMA overhead dominates).
    use_kernel = (D % 128 == 0) and (force_kernel or x.size >= _MIN_KERNEL_ELEMS)
    if not use_kernel:
        pos = enc[:S]
        return x + (pos[None, :, :] if batch_first else pos[:, None, :])

    row_mult = _row_multiple(x.dtype)
    cost = pl.CostEstimate(
        flops=S * B * D,
        transcendentals=0,
        bytes_accessed=(2 * S * B * D + S * D) * itemsize)
    io_alias = {0: 0} if donate_x else {}

    if not batch_first:
        # Seq-first: lane-dense 2-D view (S, B*D); encoding streamed as (ts, D)
        # and replicated over batch inside the kernel (per-slice adds).
        x2 = x.reshape(S, B * D)                         # free, row-major
        bc = block_batch if block_batch is not None else max(
            1, min(B, _TARGET_TILE_BYTES // max(row_mult * D * itemsize, 1)))
        ts = block_rows if block_rows is not None else _choose_row_tile(
            S, bc * D * itemsize, row_mult)
        grid = (pl.cdiv(S, ts), pl.cdiv(B, bc))
        tile_x = ts * bc * D * itemsize
        tile_e = ts * D * itemsize

        out2 = pl.pallas_call(
            _pe_add_seq_first_kernel,
            out_shape=jax.ShapeDtypeStruct((S, B * D), x.dtype),
            grid_spec=pltpu.PrefetchScalarGridSpec(
                num_scalar_prefetch=0,
                grid=grid,
                in_specs=[
                    pl.BlockSpec((ts, bc * D), lambda i, j: (i, j)),   # x rows/batch-chunk
                    pl.BlockSpec((ts, D), lambda i, j: (i, 0)),        # encoding rows
                ],
                out_specs=pl.BlockSpec((ts, bc * D), lambda i, j: (i, j)),
            ),
            compiler_params=pltpu.CompilerParams(
                dimension_semantics=("parallel", "parallel"),
                vmem_limit_bytes=_vmem_limit(tile_x, tile_e)),
            cost_estimate=cost,
            input_output_aliases=io_alias,
        )(x2, enc)
        return out2.reshape(S, B, D)

    # Batch-first: (B, S, D) blocks (bc, ts, D); seq tiles sit on the sublane
    # axis, encoding broadcasts over the leading batch dim in-kernel.
    ts = block_rows if block_rows is not None else _choose_row_tile(
        S, D * itemsize, row_mult)
    bc = block_batch if block_batch is not None else max(
        1, min(B, _TARGET_TILE_BYTES // max(ts * D * itemsize, 1)))
    grid = (pl.cdiv(B, bc), pl.cdiv(S, ts))
    tile_x = bc * ts * D * itemsize
    tile_e = ts * D * itemsize

    return pl.pallas_call(
        _pe_add_batch_first_kernel,
        out_shape=jax.ShapeDtypeStruct((B, S, D), x.dtype),
        grid_spec=pltpu.PrefetchScalarGridSpec(
            num_scalar_prefetch=0,
            grid=grid,
            in_specs=[
                pl.BlockSpec((bc, ts, D), lambda b, i: (b, i, 0)),
                pl.BlockSpec((ts, D), lambda b, i: (i, 0)),
            ],
            out_specs=pl.BlockSpec((bc, ts, D), lambda b, i: (b, i, 0)),
        ),
        compiler_params=pltpu.CompilerParams(
            dimension_semantics=("parallel", "parallel"),
            vmem_limit_bytes=_vmem_limit(tile_x, tile_e)),
        cost_estimate=cost,
        input_output_aliases=io_alias,
    )(x, enc)


if __name__ == "__main__":
    key = jax.random.PRNGKey(0)
    k0, k1, k2, k3 = jax.random.split(key, 4)

    # 1) Small, module-consistent shapes (seq-first default): seq=8, batch=2, d_model=128.
    S, B, D, MAX_LEN = 8, 2, 128, 32
    x = jax.random.normal(k0, (S, B, D), dtype=jnp.float32)
    enc = make_sinusoidal_encoding(MAX_LEN, D, dtype=jnp.float32)
    out = jax.block_until_ready(positional_encoding_forward(x, enc, force_kernel=True))
    ref = x + enc[:S][:, None, :]
    assert out.shape == x.shape
    assert jnp.allclose(out, ref, atol=1e-6, rtol=1e-6)

    # 2) Ragged multi-step grid on both axes (rows and batch chunks): exercises
    #    cdiv padding, software pipelining, and a >=2-step parallel grid.
    S2, B2, D2 = 20, 6, 128
    x2 = jax.random.normal(k1, (S2, B2, D2), dtype=jnp.float32)
    enc2 = make_sinusoidal_encoding(64, D2, dtype=jnp.float32)
    out2 = jax.block_until_ready(
        positional_encoding_forward(x2, enc2, block_rows=8, block_batch=4,
                                    force_kernel=True))
    ref2 = x2 + enc2[:S2][:, None, :]
    assert jnp.allclose(out2, ref2, atol=1e-6, rtol=1e-6)

    # 3) batch_first=True path: (B, S, D) with (bc, ts, D) blocks.
    B3, S3, D3 = 4, 16, 128
    x3 = jax.random.normal(k2, (B3, S3, D3), dtype=jnp.float32)
    enc3 = make_sinusoidal_encoding(32, D3, dtype=jnp.float32)
    out3 = jax.block_until_ready(
        positional_encoding_forward(x3, enc3, batch_first=True,
                                    block_rows=8, block_batch=2, force_kernel=True))
    ref3 = x3 + enc3[:S3][None, :, :]
    assert jnp.allclose(out3, ref3, atol=1e-6, rtol=1e-6)

    # 4) Non-128-multiple d_model -> lane-density guard falls back to XLA add.
    x4 = jax.random.normal(k3, (8, 2, 32), dtype=jnp.float32)
    enc4 = make_sinusoidal_encoding(16, 32, dtype=jnp.float32)
    out4 = jax.block_until_ready(positional_encoding_forward(x4, enc4))
    assert jnp.allclose(out4, x4 + enc4[:8][:, None, :], atol=1e-6, rtol=1e-6)

    print("KERNEL_OK")
</pallas_src>

<mosaic_0001>
module attributes {stable_mosaic.version = 11 : i64} {
  func.func @_pe_add_seq_first_kernel(%arg0: i32, %arg1: i32, %arg2: memref<8x256xf32, #tpu.memory_space<vmem>>, %arg3: memref<8x128xf32, #tpu.memory_space<vmem>>, %arg4: memref<8x256xf32, #tpu.memory_space<vmem>>) attributes {dimension_semantics = [#tpu.dimension_semantics<parallel>, #tpu.dimension_semantics<parallel>], iteration_bounds = array<i64: 1, 1>, scalar_prefetch = 0 : i64, scratch_operands = 0 : i64, tpu.core_type = #tpu.core_type<tc>, window_params = [{transform_indices = @transform_0, window_bounds = array<i64: 8, 256>}, {transform_indices = @transform_1, window_bounds = array<i64: 8, 128>}, {transform_indices = @transform_2, window_bounds = array<i64: 8, 256>}]} {
    %c0 = arith.constant 0 : index
    %c0_0 = arith.constant 0 : index
    %0 = vector.load %arg3[%c0, %c0_0] : memref<8x128xf32, #tpu.memory_space<vmem>>, vector<8x128xf32>
    %c0_1 = arith.constant 0 : index
    %c0_2 = arith.constant 0 : index
    %1 = vector.load %arg2[%c0_1, %c0_2] : memref<8x256xf32, #tpu.memory_space<vmem>>, vector<8x128xf32>
    %2 = arith.addf %1, %0 : vector<8x128xf32>
    %c0_3 = arith.constant 0 : index
    %c0_4 = arith.constant 0 : index
    %3 = vector.load %arg4[%c0_3, %c0_4] : memref<8x256xf32, #tpu.memory_space<vmem>>, vector<8x128xf32>
    tpu.vector_store %arg4[%c0_3, %c0_4], %2 {strides = array<i32>} : memref<8x256xf32, #tpu.memory_space<vmem>>, vector<8x128xf32>,
    %c0_5 = arith.constant 0 : index
    %c128 = arith.constant 128 : index
    %4 = vector.load %arg2[%c0_5, %c128] : memref<8x256xf32, #tpu.memory_space<vmem>>, vector<8x128xf32>
    %5 = arith.addf %4, %0 : vector<8x128xf32>
    %c0_6 = arith.constant 0 : index
    %c128_7 = arith.constant 128 : index
    %6 = vector.load %arg4[%c0_6, %c128_7] : memref<8x256xf32, #tpu.memory_space<vmem>>, vector<8x128xf32>
    tpu.vector_store %arg4[%c0_6, %c128_7], %5 {strides = array<i32>} : memref<8x256xf32, #tpu.memory_space<vmem>>, vector<8x128xf32>,
    return
  }
  func.func @transform_0(%arg0: i32, %arg1: i32) -> (i32, i32) {
    %c0_i32 = arith.constant 0 : i32
    return %arg0, %arg1 : i32, i32
  }
  func.func @transform_1(%arg0: i32, %arg1: i32) -> (i32, i32) {
    %c0_i32 = arith.constant 0 : i32
    %c0_i32_0 = arith.constant 0 : i32
    return %arg0, %c0_i32 : i32, i32
  }
  func.func @transform_2(%arg0: i32, %arg1: i32) -> (i32, i32) {
    %c0_i32 = arith.constant 0 : i32
    return %arg0, %arg1 : i32, i32
  }
}

</mosaic_0001>

<llo_original>
// kernel: tpu_custom_call.1
$region0: #{tpu_custom_call.1}
  #allocation0 [shape = 'u32[]', space=smem, size = 0x4, offset = 0x4, fixed_abs, tag = 'smem constant byte address 0x4 - core index']
  #allocation1 [shape = 'u32[72,128]{1,0:T(1,128)}', space=vmem, size = 0x9000, scoped, tag = 'internal scratch']
  %s0 = inlined_call_operand.hbm [shape: f32[8,256], index: 0, kind: input, shape index: {}]
  %s1 = inlined_call_operand.hbm [shape: f32[32,128], index: 1, kind: input, shape index: {}]
  %s2 = inlined_call_operand.hbm [shape: f32[8,256], index: 2, kind: output, shape index: {}]
  %s3 = sld [smem:[#allocation0]]
  $region26: #{tpu_custom_call.1} parent=0
    _
  %s5 = ssub.s32 1, %s3
  %s6 = scalar_select 0, %s5, %s3
  $region1: #{tpu_custom_call.1} parent=0
    #allocation2 [shape = 'u8[8192]{0}', space=vmem, size = 0x2000, scoped, tag = 'input window, operand 0, single buffered']
    #allocation3 [shape = 's32[1]{0}', space=sflag, size = 0x4, scoped, tag = 'scoped memory for tpu_custom_call.1']
    #allocation4 [shape = 's32[1]{0}', space=sflag, size = 0x4, scoped, tag = 'scoped memory for tpu_custom_call.1']
    #allocation5 [shape = 'u8[4096]{0}', space=vmem, size = 0x1000, scoped, tag = 'input window, operand 1, single buffered']
    #allocation6 [shape = 's32[1]{0}', space=sflag, size = 0x4, scoped, tag = 'scoped memory for tpu_custom_call.1']
    #allocation7 [shape = 'u8[8192]{0}', space=vmem, size = 0x2000, scoped, tag = 'output window, operand 0, single buffered']
    %7 = vsyncpa [#allocation3], 0
    %8 = vsyncpa [#allocation6], 0
    %9 = vsyncpa [#allocation4], 0
    // Predicated region
    $region2: #{tpu_custom_call.1} parent=1 // pred_check
      _
    $region3: #{tpu_custom_call.1} parent=1 // pred_check_branch
      %11 = sbr.rel (0) target = $region5
    $region4: #{tpu_custom_call.1} parent=1 // pred_region
      %13 = vsyncadd [#allocation3], 0
      %s15 = sshll.u32 %s0, 4
      %s16 = int_to_ptr.hbm [resolvable:$true] %s15
      %s17 = sshll.u32 [#allocation2], 4
      %s18 = int_to_ptr.vmem [resolvable:$true] %s17
      %20 = dma.hbm_to_vmem [thread:$0]  %s16, 256, %s18, [#allocation3]
    $region5: #{tpu_custom_call.1} parent=1 // pred_fallthru
      _
    // Predicated region
    $region6: #{tpu_custom_call.1} parent=1 // pred_check
      _
    $region7: #{tpu_custom_call.1} parent=1 // pred_check_branch
      %22 = sbr.rel (0) target = $region9
    $region8: #{tpu_custom_call.1} parent=1 // pred_region
      %24 = vsyncadd [#allocation6], 0
      %s26 = sshll.u32 %s1, 4
      %s27 = int_to_ptr.hbm [resolvable:$true] %s26
      %s28 = sshll.u32 [#allocation5], 4
      %s29 = int_to_ptr.vmem [resolvable:$true] %s28
      %31 = dma.hbm_to_vmem [thread:$0]  %s27, 128, %s29, [#allocation6]
    $region9: #{tpu_custom_call.1} parent=1 // pred_fallthru
      _
    // Predicated region
    $region10: #{tpu_custom_call.1} parent=1 // pred_check
      _
    $region11: #{tpu_custom_call.1} parent=1 // pred_check_branch
      %33 = sbr.rel (0) target = $region13
    $region12: #{tpu_custom_call.1} parent=1 // pred_region
      %35 = dma.done [#allocation3], 256
    $region13: #{tpu_custom_call.1} parent=1 // pred_fallthru
      _
    // Predicated region
    $region14: #{tpu_custom_call.1} parent=1 // pred_check
      _
    $region15: #{tpu_custom_call.1} parent=1 // pred_check_branch
      %37 = sbr.rel (0) target = $region17
    $region16: #{tpu_custom_call.1} parent=1 // pred_region
      %39 = dma.done [#allocation6], 128
    $region17: #{tpu_custom_call.1} parent=1 // pred_fallthru
      _
    %v40 = vld [vmem:[#allocation5] sm:$0xff]
    %v41 = vld [vmem:[#allocation2] sm:$0xff]
    %v42 = vadd.f32 %v41, %v40
    %43 = vst [vmem:[#allocation7] sm:$0xff] %v42
    %v44 = vld [vmem:[#allocation2 + $0x8] sm:$0xff]
    %v45 = vadd.f32 %v44, %v40
    %46 = vst [vmem:[#allocation7 + $0x8] sm:$0xff] %v45
    // Predicated region
    $region18: #{tpu_custom_call.1} parent=1 // pred_check
      _
    $region19: #{tpu_custom_call.1} parent=1 // pred_check_branch
      %48 = sbr.rel (0) target = $region21
    $region20: #{tpu_custom_call.1} parent=1 // pred_region
      %50 = vsyncadd [#allocation4], 0
      %s52 = sshll.u32 [#allocation7], 4
      %s53 = int_to_ptr.vmem [resolvable:$true] %s52
      %s54 = sshll.u32 %s2, 4
      %s55 = int_to_ptr.hbm [resolvable:$true] %s54
      %57 = dma.vmem_to_hbm [thread:$0]  %s53, 256, %s55, [#allocation4]
    $region21: #{tpu_custom_call.1} parent=1 // pred_fallthru
      _
    // Predicated region
    $region22: #{tpu_custom_call.1} parent=1 // pred_check
      _
    $region23: #{tpu_custom_call.1} parent=1 // pred_check_branch
      %59 = sbr.rel (0) target = $region25
    $region24: #{tpu_custom_call.1} parent=1 // pred_region
      %61 = dma.done [#allocation4], 256
    $region25: #{tpu_custom_call.1} parent=1 // pred_fallthru
      _
    %62 = vsyncpa [#allocation3], 1
    %63 = vsyncpa [#allocation6], 1
    %64 = vsyncpa [#allocation4], 1

</llo_original>
